<compile_context>
chip_gen: v7x
topology: tpu7x:2x2x1
jax: 0.10.0
libtpu: 0.0.40
codegen_flags: <defaults>
</compile_context>

<pallas_src>
import functools

import jax
import jax.numpy as jnp
from jax.experimental import pallas as pl
from jax.experimental.pallas import tpu as pltpu


def _round_up(n, m):
    return ((n + m - 1) // m) * m


def _gate_kernel(*refs, topk, route_scale, has_bias, approx_recip):
    if has_bias:
        x_ref, w_ref, b_ref, wts_ref, idx_ref = refs
    else:
        x_ref, w_ref, wts_ref, idx_ref = refs
        b_ref = None

    # --- scores = linear(x, weight) -----------------------------------------
    # Native dtype straight into the MXU, f32 accumulation.
    logits = jnp.dot(x_ref[...], w_ref[...],
                     preferred_element_type=jnp.float32)           # (tm, E) f32

    # --- softmax(dim=-1, dtype=float32) --------------------------------------
    m = jnp.max(logits, axis=-1, keepdims=True)
    e = jnp.exp(logits - m)
    denom = jnp.sum(e, axis=-1, keepdims=True)                     # (tm, 1)
    probs = e * pl.reciprocal(denom, approx=approx_recip)          # (tm, E) f32
    # `probs` == original_scores in the PyTorch code.

    if has_bias:
        scores = probs + b_ref[...].astype(jnp.float32)            # (1,E) bcast
    else:
        scores = probs

    tm, E = scores.shape
    out_cols = wts_ref.shape[-1]                                   # lane-dense (>=128)

    col = jax.lax.broadcasted_iota(jnp.int32, (tm, E), 1)
    lane = jax.lax.broadcasted_iota(jnp.int32, (tm, out_cols), 1)

    wts_out = jnp.zeros((tm, out_cols), jnp.float32)
    idx_out = jnp.zeros((tm, out_cols), jnp.int32)

    # --- iterative top-k (static topk) ---------------------------------------
    work = scores
    for k in range(topk):
        cur_max = jnp.max(work, axis=-1, keepdims=True)            # (tm, 1)
        # first (lowest) index attaining the max, matching torch.topk tie order
        idx = jnp.min(jnp.where(work == cur_max, col, E),
                      axis=-1, keepdims=True)                      # (tm, 1) int32
        onehot = col == idx
        if has_bias:
            # weights = original_scores.gather(idx)
            val = jnp.sum(jnp.where(onehot, probs, 0.0),
                          axis=-1, keepdims=True)                  # (tm, 1)
        else:
            # no bias -> scores == original_scores, gathered value is the max
            val = cur_max
        wts_out = jnp.where(lane == k, val, wts_out)
        idx_out = jnp.where(lane == k, idx, idx_out)
        if k + 1 < topk:
            work = jnp.where(onehot, -jnp.inf, work)

    if route_scale != 1.0:
        wts_out = wts_out * jnp.float32(route_scale)

    wts_ref[...] = wts_out.astype(wts_ref.dtype)   # weights.type_as(x)
    idx_ref[...] = idx_out


def gate_forward(x, weight_t, bias=None, *, topk, route_scale=1.0, tm=256,
                 approx_recip=True, vmem_limit_bytes=None):
    """DeepSeekV3 Gate forward.

    x:        [T, D]  tokens-major activations
    weight_t: [D, E]  router weight, pre-transposed (W.T)
    bias:     [E] or None (None enables the bias-free fast path)
    returns:  (weights [T, topk] in x.dtype, indices [T, topk] int32)
    """
    T, D = x.shape
    D_w, E = weight_t.shape
    assert D == D_w, "weight_t must be [D, E]"
    assert 1 <= topk <= E

    # Lane-dense output width (top-k values live in lanes [0, topk)).
    out_cols = max(128, _round_up(topk, 128))

    # Effective token tile: multiple of 8; single grid step for tiny T.
    tm_eff = min(_round_up(tm, 8), _round_up(T, 8))
    T_pad = _round_up(T, tm_eff)
    x_p = x if T_pad == T else jnp.pad(x, ((0, T_pad - T), (0, 0)))

    has_bias = bias is not None

    kernel = functools.partial(
        _gate_kernel, topk=topk, route_scale=float(route_scale),
        has_bias=has_bias, approx_recip=approx_recip)

    in_specs = [
        pl.BlockSpec((tm_eff, D), lambda i: (i, 0)),   # x tile (streamed)
        pl.BlockSpec((D, E), lambda i: (0, 0)),        # router weight (resident)
    ]
    args = [x_p, weight_t]
    if has_bias:
        in_specs.append(pl.BlockSpec((1, E), lambda i: (0, 0)))
        args.append(bias.reshape(1, E))

    if vmem_limit_bytes is None:
        x_bytes = jnp.dtype(x.dtype).itemsize
        w_bytes = jnp.dtype(weight_t.dtype).itemsize
        need = (2 * tm_eff * D * x_bytes            # x double-buffer
                + 2 * D * E * w_bytes               # resident weight (+buffer)
                + 2 * tm_eff * out_cols * (x_bytes + 4)  # output buffers
                + (2 << 20))                        # headroom / scratch
        # Cap at 64 MiB so the same setting is safe on v7x (64 MiB VMEM).
        vmem_limit_bytes = int(min(max(2 * need, 16 << 20), 64 << 20))

    wts, idx = pl.pallas_call(
        kernel,
        out_shape=(
            jax.ShapeDtypeStruct((T_pad, out_cols), x.dtype),
            jax.ShapeDtypeStruct((T_pad, out_cols), jnp.int32),
        ),
        grid_spec=pltpu.PrefetchScalarGridSpec(
            num_scalar_prefetch=0,
            grid=(T_pad // tm_eff,),
            in_specs=in_specs,
            out_specs=[
                pl.BlockSpec((tm_eff, out_cols), lambda i: (i, 0)),
                pl.BlockSpec((tm_eff, out_cols), lambda i: (i, 0)),
            ],
        ),
        compiler_params=pltpu.CompilerParams(
            dimension_semantics=("parallel",),
            vmem_limit_bytes=vmem_limit_bytes,
        ),
    )(*args)

    return wts[:T, :topk], idx[:T, :topk]


def _reference(x, weight_t, bias, topk, route_scale):
    logits = x.astype(jnp.float32) @ weight_t.astype(jnp.float32)
    probs = jax.nn.softmax(logits, axis=-1)
    scores = probs if bias is None else probs + bias[None, :].astype(jnp.float32)
    ref_idx = jax.lax.top_k(scores, topk)[1]
    ref_wts = jnp.take_along_axis(probs, ref_idx, axis=-1) * route_scale
    return ref_wts.astype(x.dtype), ref_idx.astype(jnp.int32)


if __name__ == "__main__":
    key = jax.random.PRNGKey(0)

    # --- Test 1: ModelArgs(n_head=2, d_model=32, d_head=16, d_inner=64,
    #                       seq_len=8, n_routed_experts=4, n_activated_experts=2)
    # Zero bias passed explicitly (exercises the general gather path); exact
    # reciprocal so the comparison is bit-tight.
    dim, n_routed_experts, topk, route_scale = 32, 4, 2, 1.0
    batch, seq = 2, 8
    T = batch * seq  # Gate runs on tokens flattened to [T, dim]

    k1, k2, k3, k4 = jax.random.split(key, 4)
    x = jax.random.normal(k1, (T, dim), dtype=jnp.float32)
    std = (2.0 / (n_routed_experts + dim)) ** 0.5  # xavier_normal_ on (E, dim)
    weight = jax.random.normal(k2, (n_routed_experts, dim), dtype=jnp.float32) * std
    bias = jnp.zeros((n_routed_experts,), dtype=jnp.float32)
    weight_t = weight.T

    wts, idx = gate_forward(x, weight_t, bias, topk=topk, route_scale=route_scale,
                            approx_recip=False)
    jax.block_until_ready((wts, idx))

    ref_wts, ref_idx = _reference(x, weight_t, bias, topk, route_scale)
    assert jnp.array_equal(idx, ref_idx), "test1: index mismatch"
    assert jnp.allclose(wts, ref_wts, atol=1e-5, rtol=1e-5), "test1: weight mismatch"

    # --- Test 2: larger shape exercising multi-step grid, T-padding (200 -> 256),
    # lane-dense output blocks, the bias-free fast path and approx reciprocal.
    dim2, E2, topk2 = 64, 16, 3
    T2 = 200
    x2 = jax.random.normal(k3, (T2, dim2), dtype=jnp.float32)
    std2 = (2.0 / (E2 + dim2)) ** 0.5
    weight2_t = (jax.random.normal(k4, (E2, dim2), dtype=jnp.float32) * std2).T

    wts2, idx2 = gate_forward(x2, weight2_t, None, topk=topk2, route_scale=1.0,
                              tm=128, approx_recip=True)
    jax.block_until_ready((wts2, idx2))

    ref_wts2, ref_idx2 = _reference(x2, weight2_t, None, topk2, 1.0)
    # approx reciprocal scales each row by the same factor -> ordering (indices)
    # is exact; values carry a small relative error.
    assert jnp.array_equal(idx2, ref_idx2), "test2: index mismatch"
    assert jnp.allclose(wts2, ref_wts2, atol=1e-2, rtol=1e-2), "test2: weight mismatch"

    print("KERNEL_OK")
</pallas_src>

<mosaic_0001>
module attributes {stable_mosaic.version = 11 : i64} {
  func.func @_gate_kernel(%arg0: i32, %arg1: memref<16x32xf32, #tpu.memory_space<vmem>>, %arg2: memref<32x4xf32, #tpu.memory_space<vmem>>, %arg3: memref<1x4xf32, #tpu.memory_space<vmem>>, %arg4: memref<16x128xf32, #tpu.memory_space<vmem>>, %arg5: memref<16x128xi32, #tpu.memory_space<vmem>>) attributes {dimension_semantics = [#tpu.dimension_semantics<parallel>], iteration_bounds = array<i64: 1>, scalar_prefetch = 0 : i64, scratch_operands = 0 : i64, tpu.core_type = #tpu.core_type<tc>, window_params = [{transform_indices = @transform_0, window_bounds = array<i64: 16, 32>}, {pipeline_mode = #tpu.pipeline_mode<synchronous>, transform_indices = @transform_1, window_bounds = array<i64: 32, 4>}, {pipeline_mode = #tpu.pipeline_mode<synchronous>, transform_indices = @transform_2, window_bounds = array<i64: 1, 4>}, {transform_indices = @transform_3, window_bounds = array<i64: 16, 128>}, {transform_indices = @transform_4, window_bounds = array<i64: 16, 128>}]} {
    %c0 = arith.constant 0 : index
    %c0_0 = arith.constant 0 : index
    %0 = vector.load %arg1[%c0, %c0_0] : memref<16x32xf32, #tpu.memory_space<vmem>>, vector<16x32xf32>
    %c0_1 = arith.constant 0 : index
    %c0_2 = arith.constant 0 : index
    %1 = vector.load %arg2[%c0_1, %c0_2] : memref<32x4xf32, #tpu.memory_space<vmem>>, vector<32x4xf32>
    %cst = arith.constant dense<0.000000e+00> : vector<16x4xf32>
    %2 = tpu.matmul %0, %1, %cst {dimension_numbers = #tpu.dot_dimension_numbers<[1], [0], [0], [1], [0, 0, 1, 1], [], []>} : vector<16x32xf32>, vector<32x4xf32>, vector<16x4xf32> -> vector<16x4xf32>
    %cst_3 = arith.constant dense<0xFF800000> : vector<16xf32>
    %3 = vector.multi_reduction <maximumf>, %2, %cst_3 [1] : vector<16x4xf32> to vector<16xf32>
    %4 = vector.shape_cast %3 : vector<16xf32> to vector<16x1xf32>
    %5 = vector.broadcast %4 : vector<16x1xf32> to vector<16x4xf32>
    %6 = arith.subf %2, %5 : vector<16x4xf32>
    %7 = math.exp %6 : vector<16x4xf32>
    %cst_4 = arith.constant dense<0.000000e+00> : vector<16xf32>
    %8 = vector.multi_reduction <add>, %7, %cst_4 [1] : vector<16x4xf32> to vector<16xf32>
    %9 = vector.shape_cast %8 : vector<16xf32> to vector<16x1xf32>
    %10 = tpu.reciprocal %9 : vector<16x1xf32> -> vector<16x1xf32>
    %11 = vector.broadcast %10 : vector<16x1xf32> to vector<16x4xf32>
    %12 = arith.mulf %7, %11 : vector<16x4xf32>
    %c0_5 = arith.constant 0 : index
    %c0_6 = arith.constant 0 : index
    %13 = vector.load %arg3[%c0_5, %c0_6] : memref<1x4xf32, #tpu.memory_space<vmem>>, vector<1x4xf32>
    %14 = vector.broadcast %13 : vector<1x4xf32> to vector<16x4xf32>
    %15 = arith.addf %12, %14 : vector<16x4xf32>
    %16 = tpu.iota {dimensions = array<i32: 1>} : vector<16x4xi32>
    %17 = tpu.iota {dimensions = array<i32: 1>} : vector<16x128xi32>
    %cst_7 = arith.constant 0.000000e+00 : f32
    %18 = vector.broadcast %cst_7 : f32 to vector<16x128xf32>
    %c0_i32 = arith.constant 0 : i32
    %19 = vector.broadcast %c0_i32 : i32 to vector<16x128xi32>
    %cst_8 = arith.constant dense<0xFF800000> : vector<16xf32>
    %20 = vector.multi_reduction <maximumf>, %15, %cst_8 [1] : vector<16x4xf32> to vector<16xf32>
    %21 = vector.shape_cast %20 : vector<16xf32> to vector<16x1xf32>
    %22 = vector.broadcast %21 : vector<16x1xf32> to vector<16x4xf32>
    %23 = arith.cmpf oeq, %15, %22 : vector<16x4xf32>
    %c4_i32 = arith.constant 4 : i32
    %24 = vector.broadcast %c4_i32 : i32 to vector<16x4xi32>
    %25 = arith.select %23, %16, %24 : vector<16x4xi1>, vector<16x4xi32>
    %cst_9 = arith.constant dense<2147483647> : vector<16xi32>
    %26 = vector.multi_reduction <minsi>, %25, %cst_9 [1] : vector<16x4xi32> to vector<16xi32>
    %27 = vector.shape_cast %26 : vector<16xi32> to vector<16x1xi32>
    %28 = vector.broadcast %27 : vector<16x1xi32> to vector<16x4xi32>
    %29 = arith.cmpi eq, %16, %28 : vector<16x4xi32>
    %cst_10 = arith.constant 0.000000e+00 : f32
    %30 = vector.broadcast %cst_10 : f32 to vector<16x4xf32>
    %31 = arith.select %29, %12, %30 : vector<16x4xi1>, vector<16x4xf32>
    %cst_11 = arith.constant dense<0.000000e+00> : vector<16xf32>
    %32 = vector.multi_reduction <add>, %31, %cst_11 [1] : vector<16x4xf32> to vector<16xf32>
    %33 = vector.shape_cast %32 : vector<16xf32> to vector<16x1xf32>
    %c0_i32_12 = arith.constant 0 : i32
    %34 = vector.broadcast %c0_i32_12 : i32 to vector<16x128xi32>
    %35 = arith.cmpi eq, %17, %34 : vector<16x128xi32>
    %36 = vector.shape_cast %33 : vector<16x1xf32> to vector<16x1xf32>
    %37 = vector.broadcast %36 : vector<16x1xf32> to vector<16x128xf32>
    %38 = arith.select %35, %37, %18 : vector<16x128xi1>, vector<16x128xf32>
    %c0_i32_13 = arith.constant 0 : i32
    %39 = vector.broadcast %c0_i32_13 : i32 to vector<16x128xi32>
    %40 = arith.cmpi eq, %17, %39 : vector<16x128xi32>
    %41 = vector.shape_cast %27 : vector<16x1xi32> to vector<16x1xi32>
    %42 = vector.broadcast %41 : vector<16x1xi32> to vector<16x128xi32>
    %43 = arith.select %40, %42, %19 : vector<16x128xi1>, vector<16x128xi32>
    %cst_14 = arith.constant 0xFF800000 : f32
    %44 = vector.broadcast %cst_14 : f32 to vector<16x4xf32>
    %45 = arith.select %29, %44, %15 : vector<16x4xi1>, vector<16x4xf32>
    %cst_15 = arith.constant dense<0xFF800000> : vector<16xf32>
    %46 = vector.multi_reduction <maximumf>, %45, %cst_15 [1] : vector<16x4xf32> to vector<16xf32>
    %47 = vector.shape_cast %46 : vector<16xf32> to vector<16x1xf32>
    %48 = vector.broadcast %47 : vector<16x1xf32> to vector<16x4xf32>
    %49 = arith.cmpf oeq, %45, %48 : vector<16x4xf32>
    %c4_i32_16 = arith.constant 4 : i32
    %50 = vector.broadcast %c4_i32_16 : i32 to vector<16x4xi32>
    %51 = arith.select %49, %16, %50 : vector<16x4xi1>, vector<16x4xi32>
    %cst_17 = arith.constant dense<2147483647> : vector<16xi32>
    %52 = vector.multi_reduction <minsi>, %51, %cst_17 [1] : vector<16x4xi32> to vector<16xi32>
    %53 = vector.shape_cast %52 : vector<16xi32> to vector<16x1xi32>
    %54 = vector.broadcast %53 : vector<16x1xi32> to vector<16x4xi32>
    %55 = arith.cmpi eq, %16, %54 : vector<16x4xi32>
    %cst_18 = arith.constant 0.000000e+00 : f32
    %56 = vector.broadcast %cst_18 : f32 to vector<16x4xf32>
    %57 = arith.select %55, %12, %56 : vector<16x4xi1>, vector<16x4xf32>
    %cst_19 = arith.constant dense<0.000000e+00> : vector<16xf32>
    %58 = vector.multi_reduction <add>, %57, %cst_19 [1] : vector<16x4xf32> to vector<16xf32>
    %59 = vector.shape_cast %58 : vector<16xf32> to vector<16x1xf32>
    %c1_i32 = arith.constant 1 : i32
    %60 = vector.broadcast %c1_i32 : i32 to vector<16x128xi32>
    %61 = arith.cmpi eq, %17, %60 : vector<16x128xi32>
    %62 = vector.shape_cast %59 : vector<16x1xf32> to vector<16x1xf32>
    %63 = vector.broadcast %62 : vector<16x1xf32> to vector<16x128xf32>
    %64 = arith.select %61, %63, %38 : vector<16x128xi1>, vector<16x128xf32>
    %c1_i32_20 = arith.constant 1 : i32
    %65 = vector.broadcast %c1_i32_20 : i32 to vector<16x128xi32>
    %66 = arith.cmpi eq, %17, %65 : vector<16x128xi32>
    %67 = vector.shape_cast %53 : vector<16x1xi32> to vector<16x1xi32>
    %68 = vector.broadcast %67 : vector<16x1xi32> to vector<16x128xi32>
    %69 = arith.select %66, %68, %43 : vector<16x128xi1>, vector<16x128xi32>
    %c0_21 = arith.constant 0 : index
    %c0_22 = arith.constant 0 : index
    %70 = vector.load %arg4[%c0_21, %c0_22] : memref<16x128xf32, #tpu.memory_space<vmem>>, vector<16x128xf32>
    tpu.vector_store %arg4[%c0_21, %c0_22], %64 {strides = array<i32>} : memref<16x128xf32, #tpu.memory_space<vmem>>, vector<16x128xf32>,
    %c0_23 = arith.constant 0 : index
    %c0_24 = arith.constant 0 : index
    %71 = vector.load %arg5[%c0_23, %c0_24] : memref<16x128xi32, #tpu.memory_space<vmem>>, vector<16x128xi32>
    tpu.vector_store %arg5[%c0_23, %c0_24], %69 {strides = array<i32>} : memref<16x128xi32, #tpu.memory_space<vmem>>, vector<16x128xi32>,
    return
  }
  func.func @transform_0(%arg0: i32) -> (i32, i32) {
    %c0_i32 = arith.constant 0 : i32
    %c0_i32_0 = arith.constant 0 : i32
    return %arg0, %c0_i32 : i32, i32
  }
  func.func @transform_1(%arg0: i32) -> (i32, i32) {
    %c0_i32 = arith.constant 0 : i32
    %c0_i32_0 = arith.constant 0 : i32
    %c0_i32_1 = arith.constant 0 : i32
    return %c0_i32, %c0_i32_0 : i32, i32
  }
  func.func @transform_2(%arg0: i32) -> (i32, i32) {
    %c0_i32 = arith.constant 0 : i32
    %c0_i32_0 = arith.constant 0 : i32
    %c0_i32_1 = arith.constant 0 : i32
    return %c0_i32, %c0_i32_0 : i32, i32
  }
  func.func @transform_3(%arg0: i32) -> (i32, i32) {
    %c0_i32 = arith.constant 0 : i32
    %c0_i32_0 = arith.constant 0 : i32
    return %arg0, %c0_i32 : i32, i32
  }
  func.func @transform_4(%arg0: i32) -> (i32, i32) {
    %c0_i32 = arith.constant 0 : i32
    %c0_i32_0 = arith.constant 0 : i32
    return %arg0, %c0_i32 : i32, i32
  }
}

</mosaic_0001>

<llo_original>
// kernel: tpu_custom_call.1
$region0: #{tpu_custom_call.1}
  #allocation0 [shape = 'u32[]', space=smem, size = 0x4, offset = 0x4, fixed_abs, tag = 'smem constant byte address 0x4 - core index']
  #allocation1 [shape = 'u32[144,128]{1,0:T(1,128)}', space=vmem, size = 0x12000, scoped, tag = 'internal scratch']
  %s0 = inlined_call_operand.vmem [shape: f32[16,32], index: 0, kind: input, shape index: {}]
  %s1 = inlined_call_operand.vmem [shape: f32[32,4], index: 1, kind: input, shape index: {}]
  %s2 = inlined_call_operand.vmem [shape: f32[1,4], index: 2, kind: input, shape index: {}]
  %s3 = inlined_call_operand.hbm [shape: f32[16,128], index: 3, kind: output, shape index: {0}]
  %s4 = inlined_call_operand.hbm [shape: s32[16,128], index: 4, kind: output, shape index: {1}]
  %5 = xla_tuple %s3, %s4
  %s6 = sld [smem:[#allocation0]]
  $region30: #{tpu_custom_call.1} parent=0
    _
  %s8 = ssub.s32 1, %s6
  %s9 = scalar_select 0, %s8, %s6
  $region1: #{tpu_custom_call.1} parent=0
    #allocation2 [shape = 'u8[8192]{0}', space=vmem, size = 0x2000, scoped, tag = 'output window, operand 0, single buffered']
    #allocation3 [shape = 's32[1]{0}', space=sflag, size = 0x4, scoped, tag = 'scoped memory for tpu_custom_call.1']
    #allocation4 [shape = 'u8[8192]{0}', space=vmem, size = 0x2000, scoped, tag = 'output window, operand 1, single buffered']
    #allocation5 [shape = 's32[1]{0}', space=sflag, size = 0x4, scoped, tag = 'scoped memory for tpu_custom_call.1']
    %10 = vsyncpa [#allocation3], 0
    %11 = vsyncpa [#allocation5], 0
    // Predicated region
    $region2: #{tpu_custom_call.1} parent=1 // pred_check
      _
    $region3: #{tpu_custom_call.1} parent=1 // pred_check_branch
      %13 = sbr.rel (0) target = $region5
    $region4: #{tpu_custom_call.1} parent=1 // pred_region
      _
    $region5: #{tpu_custom_call.1} parent=1 // pred_fallthru
      _
    // Predicated region
    $region6: #{tpu_custom_call.1} parent=1 // pred_check
      _
    $region7: #{tpu_custom_call.1} parent=1 // pred_check_branch
      %15 = sbr.rel (0) target = $region9
    $region8: #{tpu_custom_call.1} parent=1 // pred_region
      _
    $region9: #{tpu_custom_call.1} parent=1 // pred_fallthru
      _
    // Predicated region
    $region10: #{tpu_custom_call.1} parent=1 // pred_check
      _
    $region11: #{tpu_custom_call.1} parent=1 // pred_check_branch
      %17 = sbr.rel (0) target = $region13
    $region12: #{tpu_custom_call.1} parent=1 // pred_region
      _
    $region13: #{tpu_custom_call.1} parent=1 // pred_fallthru
      _
    %v18 = vld [vmem:[%s0] sm:$0xff]
    %v19 = vld [vmem:[%s0 + $0x8] sm:$0xff]
    %v20 = vld [vmem:[%s1] sm:$0xff]
    %v21 = vld [vmem:[%s1 + $0x8] sm:$0xff]
    %v22 = vld [vmem:[%s1 + $0x10] sm:$0xff]
    %v23 = vld [vmem:[%s1 + $0x18] sm:$0xff]
    %vm24 = vcmask 261120
    %v26 = vsel %vm24, %v18, 0
    %v29 = vsel %vm24, %v19, 0
    %31 = vmatprep.subr.mxu0 0.0
    %32 = vmatpush1.msra.mxu0 %v20
    %33 = vmatprep.subr.mxu0 0.0
    %34 = vmatpush1.msra.mxu0 %v21
    %35 = vmatprep.subr.mxu0 0.0
    %36 = vmatpush1.msra.mxu0 %v22
    %37 = vmatprep.subr.mxu0 0.0
    %38 = vmatpush1.msra.mxu0 %v23
    %39 = vmatprep.subr.mxu0 0.0
    %40 = vmatpush1.msra.mxu0 0.0
    %41 = vmatprep.subr.mxu0 0.0
    %42 = vmatpush1.msra.mxu0 0.0
    %43 = vmatprep.subr.mxu0 0.0
    %44 = vmatpush1.msra.mxu0 0.0
    %45 = vmatprep.subr.mxu0 0.0
    %46 = vmatpush1.msra.mxu0 0.0
    %47 = vmatprep.subr.mxu0 0.0
    %48 = vmatpush1.msra.mxu0 0.0
    %49 = vmatprep.subr.mxu0 0.0
    %50 = vmatpush1.msra.mxu0 0.0
    %51 = vmatprep.subr.mxu0 0.0
    %52 = vmatpush1.msra.mxu0 0.0
    %53 = vmatprep.subr.mxu0 0.0
    %54 = vmatpush1.msra.mxu0 0.0
    %55 = vmatprep.subr.mxu0 0.0
    %56 = vmatpush1.msra.mxu0 0.0
    %57 = vmatprep.subr.mxu0 0.0
    %58 = vmatpush1.msra.mxu0 0.0
    %59 = vmatprep.subr.mxu0 0.0
    %60 = vmatpush1.msra.mxu0 0.0
    %61 = vmatprep.subr.mxu0 0.0
    %62 = vmatpush1.msra.mxu0 0.0
    %63 = vmatprep.subr.mxu0 0.0
    %64 = vmatpush1.msra.mxu0 0.0
    %65 = vmatprep.subr.mxu0 0.0
    %66 = vmatpush1.msra.mxu0 0.0
    %67 = vmatprep.subr.mxu0 0.0
    %68 = vmatpush1.msra.mxu0 0.0
    %69 = vmatprep.subr.mxu0 0.0
    %70 = vmatpush1.msra.mxu0 0.0
    %71 = vmatprep.subr.mxu0 0.0
    %72 = vmatpush1.msra.mxu0 0.0
    %73 = vmatprep.subr.mxu0 0.0
    %74 = vmatpush1.msra.mxu0 0.0
    %75 = vmatprep.subr.mxu0 0.0
    %76 = vmatpush1.msra.mxu0 0.0
    %77 = vmatprep.subr.mxu0 0.0
    %78 = vmatpush1.msra.mxu0 0.0
    %79 = vmatprep.subr.mxu0 0.0
    %80 = vmatpush1.msra.mxu0 0.0
    %81 = vmatprep.subr.mxu0 0.0
    %82 = vmatpush1.msra.mxu0 0.0
    %83 = vmatprep.subr.mxu0 0.0
    %84 = vmatpush1.msra.mxu0 0.0
    %85 = vmatprep.subr.mxu0 0.0
    %86 = vmatpush1.msra.mxu0 0.0
    %87 = vmatprep.subr.mxu0 0.0
    %88 = vmatpush1.msra.mxu0 0.0
    %89 = vmatprep.subr.mxu0 0.0
    %90 = vmatpush1.msra.mxu0 0.0
    %91 = vmatprep.subr.mxu0 0.0
    %92 = vmatpush1.msra.mxu0 0.0
    %93 = vmatprep.subr.mxu0 0.0
    %94 = vmatpush1.msra.mxu0 0.0
    %95 = vmatprep.mubr.f32.mxu0 0.0
    %96 = vmatmul.mubr.f32.gmra.mrb[0].mxu0 %v26
    %v97 = vpop.f32.mrb[0].mxu0
    %v98 = vadd.f32 0.0, %v97
    %v99 = vpop.f32.mrb[0].mxu0
    %100 = vmatprep.mubr.f32.mxu0 0.0
    %101 = vmatmul.mubr.f32.gmra.mrb[0].mxu0 %v29
    %v102 = vpop.f32.mrb[0].mxu0
    %v103 = vadd.f32 0.0, %v102
    %v104 = vpop.f32.mrb[0].mxu0
    %105 = vdwg.mxu0
    %vm106 = vcmask 31744
    %v107 = vsel %vm106, %v98, -inf
    %108 = vmax.xlane.f32.xlu0 %v107
    %v109 = vpop.xlane.xlu0 %108
    %v110 = vsel %vm106, %v103, -inf
    %111 = vmax.xlane.f32.xlu0 %v110
    %v112 = vpop.xlane.xlu0 %111
    %v113 = vsub.f32 %v98, %v109
    %v114 = vsub.f32 %v103, %v112
    %v115 = vmul.f32 %v113, 1.442695
    %v116 = vpow.pop %v115
    %v117 = vmul.f32 %v114, 1.442695
    %v118 = vpow.pop %v117
    %v119 = vsel %vm106, %v116, 0.0
    %120 = vadd.xlane.f32.xlu0 %v119
    %v121 = vpop.xlane.xlu0 %120
    %v122 = vsel %vm106, %v118, 0.0
    %123 = vadd.xlane.f32.xlu0 %v122
    %v124 = vpop.xlane.xlu0 %123
    %v125 = vrcp.pop %v121
    %v126 = vrcp.pop %v124
    %v127 = vmul.f32 %v116, %v125
    %v128 = vmul.f32 %v118, %v126
    %v129 = vld [vmem:[%s2] sm:$0x1]
    %v131 = vlaneseq
    %v132 = vshrl.u32 %v131, 7
    %v133 = vsub.s32 0, %v132
    %v134 = vrot.slane %v129, %v133
    %v136 = vadd.f32 %v127, %v134
    %v137 = vadd.f32 %v128, %v134
    %v138 = vlaneseq
    %v139 = vand.u32 %v138, 127
    %v140 = vsel %vm106, %v136, -inf
    %141 = vmax.xlane.f32.xlu0 %v140
    %v142 = vpop.xlane.xlu0 %141
    %v143 = vsel %vm106, %v137, -inf
    %144 = vmax.xlane.f32.xlu0 %v143
    %v145 = vpop.xlane.xlu0 %144
    %vm146 = vcmp.eq.f32.partialorder %v136, %v142
    %vm147 = vcmp.eq.f32.partialorder %v137, %v145
    %v148 = vsel %vm146, %v139, 4
    %v149 = vsel %vm147, %v139, 4
    %v150 = vsel %vm106, %v148, 2147483647
    %v151 = vand.u32 %v150, 65535
    %v152 = vshra.s32 %v150, 16
    %v153 = vcvt.s32.f32 %v151
    %v154 = vcvt.s32.f32 %v152
    %155 = vmin.xlane.f32.xlu0 %v154
    %v156 = vpop.xlane.xlu0 %155
    %vm157 = vcmp.eq.f32.partialorder %v154, %v156
    %v158 = vsel %vm157, %v153, inf
    %159 = vmin.xlane.f32.xlu0 %v158
    %v160 = vpop.xlane.xlu0 %159
    %v161 = vcvt.f32.s32 %v160
    %v162 = vcvt.f32.s32 %v156
    %v163 = vshll.u32 %v162, 16
    %v164 = vadd.s32 %v163, %v161
    %v165 = vsel %vm106, %v149, 2147483647
    %v166 = vand.u32 %v165, 65535
    %v167 = vshra.s32 %v165, 16
    %v168 = vcvt.s32.f32 %v166
    %v169 = vcvt.s32.f32 %v167
    %170 = vmin.xlane.f32.xlu0 %v169
    %v171 = vpop.xlane.xlu0 %170
    %vm172 = vcmp.eq.f32.partialorder %v169, %v171
    %v173 = vsel %vm172, %v168, inf
    %174 = vmin.xlane.f32.xlu0 %v173
    %v175 = vpop.xlane.xlu0 %174
    %v176 = vcvt.f32.s32 %v175
    %v177 = vcvt.f32.s32 %v171
    %v178 = vshll.u32 %v177, 16
    %v179 = vadd.s32 %v178, %v176
    %vm180 = vcmp.eq.s32.totalorder %v139, %v164
    %vm181 = vcmp.eq.s32.totalorder %v139, %v179
    %v182 = vsel %vm180, %v127, 0.0
    %v183 = vsel %vm181, %v128, 0.0
    %v184 = vsel %vm106, %v182, 0.0
    %185 = vadd.xlane.f32.xlu0 %v184
    %v186 = vpop.xlane.xlu0 %185
    %v187 = vsel %vm106, %v183, 0.0
    %188 = vadd.xlane.f32.xlu0 %v187
    %v189 = vpop.xlane.xlu0 %188
    %vm190 = vcmp.eq.s32.totalorder %v139, 0
    %v191 = vsel %vm190, %v186, 0.0
    %v192 = vsel %vm190, %v189, 0.0
    %v193 = vsel %vm190, %v164, 0
    %v194 = vsel %vm190, %v179, 0
    %v195 = vsel %vm180, -inf, %v136
    %v196 = vsel %vm181, -inf, %v137
    %v197 = vsel %vm106, %v195, -inf
    %198 = vmax.xlane.f32.xlu0 %v197
    %v199 = vpop.xlane.xlu0 %198
    %v200 = vsel %vm106, %v196, -inf
    %201 = vmax.xlane.f32.xlu0 %v200
    %v202 = vpop.xlane.xlu0 %201
    %vm203 = vcmp.eq.f32.partialorder %v195, %v199
    %vm204 = vcmp.eq.f32.partialorder %v196, %v202
    %v205 = vsel %vm203, %v139, 4
    %v206 = vsel %vm204, %v139, 4
    %v207 = vsel %vm106, %v205, 2147483647
    %v208 = vand.u32 %v207, 65535
    %v209 = vshra.s32 %v207, 16
    %v210 = vcvt.s32.f32 %v208
    %v211 = vcvt.s32.f32 %v209
    %212 = vmin.xlane.f32.xlu0 %v211
    %v213 = vpop.xlane.xlu0 %212
    %vm214 = vcmp.eq.f32.partialorder %v211, %v213
    %v215 = vsel %vm214, %v210, inf
    %216 = vmin.xlane.f32.xlu0 %v215
    %v217 = vpop.xlane.xlu0 %216
    %v218 = vcvt.f32.s32 %v217
    %v219 = vcvt.f32.s32 %v213
    %v220 = vshll.u32 %v219, 16
    %v221 = vadd.s32 %v220, %v218
    %v222 = vsel %vm106, %v206, 2147483647
    %v223 = vand.u32 %v222, 65535
    %v224 = vshra.s32 %v222, 16
    %v225 = vcvt.s32.f32 %v223
    %v226 = vcvt.s32.f32 %v224
    %227 = vmin.xlane.f32.xlu0 %v226
    %v228 = vpop.xlane.xlu0 %227
    %vm229 = vcmp.eq.f32.partialorder %v226, %v228
    %v230 = vsel %vm229, %v225, inf
    %231 = vmin.xlane.f32.xlu0 %v230
    %v232 = vpop.xlane.xlu0 %231
    %v233 = vcvt.f32.s32 %v232
    %v234 = vcvt.f32.s32 %v228
    %v235 = vshll.u32 %v234, 16
    %v236 = vadd.s32 %v235, %v233
    %vm237 = vcmp.eq.s32.totalorder %v139, %v221
    %vm238 = vcmp.eq.s32.totalorder %v139, %v236
    %v239 = vsel %vm237, %v127, 0.0
    %v240 = vsel %vm238, %v128, 0.0
    %v241 = vsel %vm106, %v239, 0.0
    %242 = vadd.xlane.f32.xlu0 %v241
    %v243 = vpop.xlane.xlu0 %242
    %v244 = vsel %vm106, %v240, 0.0
    %245 = vadd.xlane.f32.xlu0 %v244
    %v246 = vpop.xlane.xlu0 %245
    %vm247 = vcmp.eq.s32.totalorder %v139, 1
    %v248 = vsel %vm247, %v243, %v191
    %v249 = vsel %vm247, %v246, %v192
    %v250 = vsel %vm247, %v221, %v193
    %v251 = vsel %vm247, %v236, %v194
    %252 = vst [vmem:[#allocation2] sm:$0xff] %v248
    %253 = vst [vmem:[#allocation2 + $0x8] sm:$0xff] %v249
    %254 = vst [vmem:[#allocation4] sm:$0xff] %v250
    %255 = vst [vmem:[#allocation4 + $0x8] sm:$0xff] %v251
    // Predicated region
    $region14: #{tpu_custom_call.1} parent=1 // pred_check
      _
    $region15: #{tpu_custom_call.1} parent=1 // pred_check_branch
      %257 = sbr.rel (0) target = $region17
    $region16: #{tpu_custom_call.1} parent=1 // pred_region
      %s259 = ssub.s32 256, 256
      %260 = vsyncadd [#allocation3], %s259
      %s261 = sshll.u32 [#allocation2], 4
      %s262 = int_to_ptr.vmem [resolvable:$true] %s261
      %267 = dma.vmem_to_hbm [thread:$0]  %s262, 256, %s3, [#allocation3], 128, 128, 8
    $region17: #{tpu_custom_call.1} parent=1 // pred_fallthru
      _
    // Predicated region
    $region18: #{tpu_custom_call.1} parent=1 // pred_check
      _
    $region19: #{tpu_custom_call.1} parent=1 // pred_check_branch
      %269 = sbr.rel (0) target = $region21
    $region20: #{tpu_custom_call.1} parent=1 // pred_region
      %s271 = ssub.s32 256, 256
      %272 = vsyncadd [#allocation5], %s271
      %s273 = sshll.u32 [#allocation4], 4
      %s274 = int_to_ptr.vmem [resolvable:$true] %s273
      %279 = dma.vmem_to_hbm [thread:$0]  %s274, 256, %s4, [#allocation5], 128, 128, 8
    $region21: #{tpu_custom_call.1} parent=1 // pred_fallthru
      _
    // Predicated region
    $region22: #{tpu_custom_call.1} parent=1 // pred_check
      _
    $region23: #{tpu_custom_call.1} parent=1 // pred_check_branch
      %281 = sbr.rel (0) target = $region25
    $region24: #{tpu_custom_call.1} parent=1 // pred_region
      %282 = dma.done [#allocation3], 256
    $region25: #{tpu_custom_call.1} parent=1 // pred_fallthru
      _
    // Predicated region
    $region26: #{tpu_custom_call.1} parent=1 // pred_check
      _
    $region27: #{tpu_custom_call.1} parent=1 // pred_check_branch
      %284 = sbr.rel (0) target = $region29
    $region28: #{tpu_custom_call.1} parent=1 // pred_region
      %285 = dma.done [#allocation5], 256
    $region29: #{tpu_custom_call.1} parent=1 // pred_fallthru
      _
    %286 = vsyncpa [#allocation3], 1
    %287 = vsyncpa [#allocation5], 1

</llo_original>
